<compile_context>
chip_gen: v5e
topology: v5e:2x2
jax: 0.10.0
libtpu: 0.0.40
codegen_flags: <defaults>
</compile_context>

<pallas_src>
import jax
import jax.numpy as jnp
from jax.experimental import pallas as pl
from jax.experimental.pallas import tpu as pltpu


def _pos_emb_copy_kernel(table_ref, out_ref):
    # table_ref: (tile_t, tile_e) window of the embedding table, rows
    #            [i*tile_t, (i+1)*tile_t) == positions, since the positional
    #            lookup of arange(T) is exactly table[:T].
    # out_ref  : matching (tile_t, tile_e) window of the output.
    out_ref[...] = table_ref[...]


def _choose_row_tile(T, V):
    """Row tile: multiple of 8 (sublane) capped at 512, valid for both the
    (V, E) input and the (T, E) output blocks."""
    if T % 8 == 0:
        return min(T, 512)
    if T == V:
        return T            # block == full array dim is always legal
    return 8                # partial last block handled by Pallas masking


def _choose_col_tile(E):
    """Col tile: lane-dense multiple of 128 when possible, else full E."""
    if E % 128 == 0:
        return min(E, 1024)
    return E                # block == full array dim (e.g. toy n_embd=32)


def positional_embedding_forward(x, table):
    """x: (B, T) int token ids (only T = x.shape[1] is used, as in PyTorch);
    table: (block_size, n_embd) float32 embedding weight.
    Returns (1, T, n_embd) float32 == table[:T][None]."""
    T = x.shape[1]
    V, E = table.shape
    assert T <= V, f"sequence length {T} exceeds block_size {V}"

    tile_t = _choose_row_tile(T, V)
    tile_e = _choose_col_tile(E)
    grid = (pl.cdiv(T, tile_t), pl.cdiv(E, tile_e))

    out = pl.pallas_call(
        _pos_emb_copy_kernel,
        out_shape=jax.ShapeDtypeStruct((T, E), table.dtype),
        grid_spec=pltpu.PrefetchScalarGridSpec(
            num_scalar_prefetch=0,
            grid=grid,
            in_specs=[
                # Only the first T rows of the (V, E) table are ever DMA'd.
                pl.BlockSpec((tile_t, tile_e), lambda i, j: (i, j)),
            ],
            out_specs=pl.BlockSpec((tile_t, tile_e), lambda i, j: (i, j)),
        ),
        compiler_params=pltpu.CompilerParams(
            dimension_semantics=("parallel", "parallel")),
    )(table)

    return out.reshape(1, T, E)


if __name__ == "__main__":
    # Module config (small, consistent with the forward pass):
    block_size = 16   # max positions the Embedding supports (V)
    n_embd = 32       # embedding width (E)
    batch = 2
    seq = 8           # T = x.size(1), must be <= block_size

    key = jax.random.PRNGKey(0)
    k_tab, k_x = jax.random.split(key)

    # Deterministic parameter init (nn.Embedding weight ~ N(0, 1) by default).
    emb_table = jax.random.normal(k_tab, (block_size, n_embd), dtype=jnp.float32)

    # x: (B, T) int32 token ids (only its seq length matters for this module).
    x = jax.random.randint(k_x, (batch, seq), 0, block_size, dtype=jnp.int32)

    out = positional_embedding_forward(x, emb_table)
    out = jax.block_until_ready(out)

    # Reference check: embedding(arange(T)) == table[:T]
    ref = emb_table[:seq][None, :, :]
    assert out.shape == (1, seq, n_embd), out.shape
    assert jnp.allclose(out, ref, atol=0.0), "mismatch vs reference gather"

    print("KERNEL_OK")
</pallas_src>

<mosaic_0001>
module attributes {stable_mosaic.version = 11 : i64} {
  func.func @_pos_emb_copy_kernel(%arg0: i32, %arg1: i32, %arg2: memref<8x32xf32, #tpu.memory_space<vmem>>, %arg3: memref<8x32xf32, #tpu.memory_space<vmem>>) attributes {dimension_semantics = [#tpu.dimension_semantics<parallel>, #tpu.dimension_semantics<parallel>], iteration_bounds = array<i64: 1, 1>, scalar_prefetch = 0 : i64, scratch_operands = 0 : i64, tpu.core_type = #tpu.core_type<tc>, window_params = [{transform_indices = @transform_0, window_bounds = array<i64: 8, 32>}, {transform_indices = @transform_1, window_bounds = array<i64: 8, 32>}]} {
    %c0 = arith.constant 0 : index
    %c0_0 = arith.constant 0 : index
    %0 = vector.load %arg2[%c0, %c0_0] : memref<8x32xf32, #tpu.memory_space<vmem>>, vector<8x32xf32>
    %c0_1 = arith.constant 0 : index
    %c0_2 = arith.constant 0 : index
    %1 = vector.load %arg3[%c0_1, %c0_2] : memref<8x32xf32, #tpu.memory_space<vmem>>, vector<8x32xf32>
    tpu.vector_store %arg3[%c0_1, %c0_2], %0 {strides = array<i32>} : memref<8x32xf32, #tpu.memory_space<vmem>>, vector<8x32xf32>,
    return
  }
  func.func @transform_0(%arg0: i32, %arg1: i32) -> (i32, i32) {
    %c0_i32 = arith.constant 0 : i32
    return %arg0, %arg1 : i32, i32
  }
  func.func @transform_1(%arg0: i32, %arg1: i32) -> (i32, i32) {
    %c0_i32 = arith.constant 0 : i32
    return %arg0, %arg1 : i32, i32
  }
}

</mosaic_0001>

<llo_original>
// kernel: tpu_custom_call.1
$region0: #{tpu_custom_call.1}
  #allocation0 [shape = 'u32[]', space=smem, size = 0x4, offset = 0x4, fixed_abs, tag = 'smem constant byte address 0x4 - core index']
  #allocation1 [shape = 'u32[72,128]{1,0:T(1,128)}', space=vmem, size = 0x9000, scoped, tag = 'internal scratch']
  %s0 = inlined_call_operand.hbm [shape: f32[16,32], index: 0, kind: input, shape index: {}]
  %s1 = inlined_call_operand.hbm [shape: f32[8,32], index: 1, kind: output, shape index: {}]
  %s2 = sld [smem:[#allocation0]]
  $region18: #{tpu_custom_call.1} parent=0
    _
  %s4 = ssub.s32 1, %s2
  %s5 = scalar_select 0, %s4, %s2
  $region1: #{tpu_custom_call.1} parent=0
    #allocation2 [shape = 'u8[4096]{0}', space=vmem, size = 0x1000, scoped, tag = 'input window, operand 0, single buffered']
    #allocation3 [shape = 's32[1]{0}', space=sflag, size = 0x4, scoped, tag = 'scoped memory for tpu_custom_call.1']
    #allocation4 [shape = 's32[1]{0}', space=sflag, size = 0x4, scoped, tag = 'scoped memory for tpu_custom_call.1']
    #allocation5 [shape = 'u8[4096]{0}', space=vmem, size = 0x1000, scoped, tag = 'output window, operand 0, single buffered']
    %6 = vsyncpa [#allocation3], 0
    %7 = vsyncpa [#allocation4], 0
    // Predicated region
    $region2: #{tpu_custom_call.1} parent=1 // pred_check
      _
    $region3: #{tpu_custom_call.1} parent=1 // pred_check_branch
      %9 = sbr.rel (0) target = $region5
    $region4: #{tpu_custom_call.1} parent=1 // pred_region
      %11 = vsyncadd [#allocation3], 0
      %s13 = sshll.u32 %s0, 4
      %s14 = int_to_ptr.hbm [resolvable:$true] %s13
      %s15 = sshll.u32 [#allocation2], 4
      %s16 = int_to_ptr.vmem [resolvable:$true] %s15
      %18 = dma.hbm_to_vmem [thread:$0]  %s14, 128, %s16, [#allocation3]
    $region5: #{tpu_custom_call.1} parent=1 // pred_fallthru
      _
    // Predicated region
    $region6: #{tpu_custom_call.1} parent=1 // pred_check
      _
    $region7: #{tpu_custom_call.1} parent=1 // pred_check_branch
      %20 = sbr.rel (0) target = $region9
    $region8: #{tpu_custom_call.1} parent=1 // pred_region
      %22 = dma.done [#allocation3], 128
    $region9: #{tpu_custom_call.1} parent=1 // pred_fallthru
      _
    %v23 = vld [vmem:[#allocation2] sm:$0xff]
    %vm24 = vcmask 261120
    %25 = vst.msk [vmem:[#allocation5] sm:$0xff] %vm24, %v23
    // Predicated region
    $region10: #{tpu_custom_call.1} parent=1 // pred_check
      _
    $region11: #{tpu_custom_call.1} parent=1 // pred_check_branch
      %27 = sbr.rel (0) target = $region13
    $region12: #{tpu_custom_call.1} parent=1 // pred_region
      %29 = vsyncadd [#allocation4], 0
      %s31 = sshll.u32 [#allocation5], 4
      %s32 = int_to_ptr.vmem [resolvable:$true] %s31
      %s33 = sshll.u32 %s1, 4
      %s34 = int_to_ptr.hbm [resolvable:$true] %s33
      %36 = dma.vmem_to_hbm [thread:$0]  %s32, 128, %s34, [#allocation4]
    $region13: #{tpu_custom_call.1} parent=1 // pred_fallthru
      _
    // Predicated region
    $region14: #{tpu_custom_call.1} parent=1 // pred_check
      _
    $region15: #{tpu_custom_call.1} parent=1 // pred_check_branch
      %38 = sbr.rel (0) target = $region17
    $region16: #{tpu_custom_call.1} parent=1 // pred_region
      %40 = dma.done [#allocation4], 128
    $region17: #{tpu_custom_call.1} parent=1 // pred_fallthru
      _
    %41 = vsyncpa [#allocation3], 1
    %42 = vsyncpa [#allocation4], 1

</llo_original>
